<compile_context>
chip_gen: v6e
topology: v6e:2x2x1
jax: 0.10.0
libtpu: 0.0.40
codegen_flags: <defaults>
</compile_context>

<pallas_src>
import functools

import jax
import jax.numpy as jnp
from jax import lax
from jax.experimental import pallas as pl
from jax.experimental.pallas import tpu as pltpu


def _conv_leaky_kernel(x_ref, w_ref, b_ref, o_ref, *,
                       kh_taps, stride, neg_slope, use_bf16_matmul):
    # x_ref: (1, Hp, WpC_pad)        zero-padded, channel-packed input rows
    # w_ref: (KH*WpC_pad, Wo*Cout)   block-Toeplitz im2col weight matrix
    # b_ref: (1, Wo*Cout)            bias tiled along the packed W*Cout lanes
    # o_ref: (1, Ho, Wo*Cout)        lane-dense output slab
    _, Ho, _ = o_ref.shape

    # im2col over the KH row taps: read each shifted row-block directly off the
    # VMEM ref (no full-tile vreg materialization).  Blocks are 128-lane
    # aligned, so the lane-axis concatenation is a cheap vreg placement.
    blocks = []
    for kh in range(kh_taps):
        if stride == 1:
            blocks.append(x_ref[0, kh:kh + Ho, :])                 # (Ho, WpC_pad)
        else:
            blocks.append(x_ref[0, pl.ds(kh, Ho, stride=stride), :])
    a = blocks[0] if kh_taps == 1 else jnp.concatenate(blocks, axis=-1)

    w = w_ref[...]
    if use_bf16_matmul:
        # bf16 MXU operands (v6e/v7x native), f32 accumulation preserved.
        a = a.astype(jnp.bfloat16)
        w = w.astype(jnp.bfloat16)

    # Single fused MXU matmul with f32 accumulator.
    acc = jnp.dot(a, w, preferred_element_type=jnp.float32)
    acc = acc + b_ref[...].astype(jnp.float32)        # bias: one VPU add
    acc = jnp.maximum(acc, neg_slope * acc)           # LeakyReLU: mul + max
    o_ref[...] = acc[None].astype(o_ref.dtype)        # unmasked lane-dense store


def conv_leaky(x_nchw, w_oihw, bias, *, stride=1, kernel_size=3,
               neg_slope=0.01, use_bf16_matmul=False):
    """ConvLeaky forward. x: (N, Cin, H, W) NCHW, weights OIHW (PyTorch-style)."""
    if kernel_size == 3:
        padding = 1
    elif kernel_size == 5:
        padding = 2
    else:
        raise ValueError("kernel_size must be 3 or 5")

    N, Cin, H, W = x_nchw.shape
    Cout, Cin_w, KH, KW = w_oihw.shape
    assert Cin_w == Cin
    Hp, Wp = H + 2 * padding, W + 2 * padding
    Ho = (Hp - KH) // stride + 1
    Wo = (Wp - KW) // stride + 1
    dt = x_nchw.dtype

    WpC = Wp * Cin
    WpC_pad = ((WpC + 127) // 128) * 128     # lane-align each kh row-block
    WoC = Wo * Cout

    # ---- interface glue (NCHW in / NCHW out to match nn.Conv2d) ----------
    # TODO(synk): if the surrounding model runs NHWC these transposes (full HBM
    # round trips) disappear entirely; kept only for the NCHW interface.
    x_nhwc = jnp.transpose(x_nchw, (0, 2, 3, 1))
    x_pad = jnp.pad(x_nhwc,
                    ((0, 0), (padding, padding), (padding, padding), (0, 0)))
    x_packed = x_pad.reshape(N, Hp, WpC)
    x_packed = jnp.pad(x_packed, ((0, 0), (0, 0), (0, WpC_pad - WpC)))

    # Block-Toeplitz im2col weight matrix:
    #   B[kh*WpC_pad + wp*Cin + ci, w*Cout + co] = w[co, ci, kh, kw]
    #       iff wp == w*stride + kw, else 0.
    w_khkwic = jnp.transpose(w_oihw, (2, 3, 1, 0)).astype(dt)     # (KH,KW,Cin,Cout)
    wp_of = jnp.arange(Wo)[:, None] * stride + jnp.arange(KW)[None, :]   # (Wo,KW)
    sel = (wp_of[:, :, None] == jnp.arange(Wp)[None, None, :]).astype(dt)  # (Wo,KW,Wp)
    w_mat = jnp.einsum('wkp,hkic->hpiwc', sel, w_khkwic)          # (KH,Wp,Cin,Wo,Cout)
    w_mat = w_mat.reshape(KH, WpC, WoC)
    w_mat = jnp.pad(w_mat, ((0, 0), (0, WpC_pad - WpC), (0, 0)))
    w_mat = w_mat.reshape(KH * WpC_pad, WoC)

    b_row = jnp.tile(bias.astype(dt), Wo).reshape(1, WoC)         # [w*Cout+co]=bias[co]

    kernel = functools.partial(
        _conv_leaky_kernel, kh_taps=KH, stride=stride,
        neg_slope=neg_slope, use_bf16_matmul=use_bf16_matmul)

    out_packed = pl.pallas_call(
        kernel,
        out_shape=jax.ShapeDtypeStruct((N, Ho, WoC), dt),
        grid_spec=pltpu.PrefetchScalarGridSpec(
            num_scalar_prefetch=0,
            grid=(N,),
            in_specs=[
                pl.BlockSpec((1, Hp, WpC_pad), lambda n: (n, 0, 0)),
                pl.BlockSpec((KH * WpC_pad, WoC), lambda n: (0, 0)),
                pl.BlockSpec((1, WoC), lambda n: (0, 0)),
            ],
            out_specs=pl.BlockSpec((1, Ho, WoC), lambda n: (n, 0, 0)),
        ),
        compiler_params=pltpu.CompilerParams(
            dimension_semantics=("parallel",),
            vmem_limit_bytes=32 * 1024 * 1024),
    )(x_packed, w_mat, b_row)

    # Free row-major reshape, then back to PyTorch NCHW convention.
    out_nhwc = out_packed.reshape(N, Ho, Wo, Cout)
    return jnp.transpose(out_nhwc, (0, 3, 1, 2))


def _reference(x_nchw, w_oihw, bias, *, stride, padding, neg_slope=0.01):
    y = lax.conv_general_dilated(
        x_nchw, w_oihw,
        window_strides=(stride, stride),
        padding=((padding, padding), (padding, padding)),
        dimension_numbers=("NCHW", "OIHW", "NCHW"),
        precision=lax.Precision.HIGHEST)
    y = y + bias.reshape(1, -1, 1, 1)
    return jnp.where(y >= 0, y, neg_slope * y)


if __name__ == "__main__":
    # Small shapes consistent with the module: N=2, Cin=4, Cout=8, 16x16 spatial.
    N, Cin, Cout, H, W = 2, 4, 8, 16, 16
    kernel_size, stride = 3, 1

    key = jax.random.PRNGKey(0)
    kx, kw, kb = jax.random.split(key, 3)
    x = jax.random.normal(kx, (N, Cin, H, W), dtype=jnp.float32)
    fan_in = Cin * kernel_size * kernel_size
    bound = 1.0 / (fan_in ** 0.5)
    w = jax.random.uniform(kw, (Cout, Cin, kernel_size, kernel_size),
                           minval=-bound, maxval=bound, dtype=jnp.float32)
    b = jax.random.uniform(kb, (Cout,), minval=-bound, maxval=bound,
                           dtype=jnp.float32)

    out = conv_leaky(x, w, b, stride=stride, kernel_size=kernel_size)
    out = jax.block_until_ready(out)

    ref = _reference(x, w, b, stride=stride, padding=1)
    assert out.shape == ref.shape
    assert jnp.allclose(out, ref, atol=1e-4, rtol=1e-4), "mismatch vs reference"

    print("KERNEL_OK")
</pallas_src>

<mosaic_0001>
module attributes {stable_mosaic.version = 11 : i64} {
  func.func @_conv_leaky_kernel(%arg0: i32, %arg1: memref<1x18x128xf32, #tpu.memory_space<vmem>>, %arg2: memref<384x128xf32, #tpu.memory_space<vmem>>, %arg3: memref<1x128xf32, #tpu.memory_space<vmem>>, %arg4: memref<1x16x128xf32, #tpu.memory_space<vmem>>) attributes {dimension_semantics = [#tpu.dimension_semantics<parallel>], iteration_bounds = array<i64: 2>, scalar_prefetch = 0 : i64, scratch_operands = 0 : i64, tpu.core_type = #tpu.core_type<tc>, window_params = [{transform_indices = @transform_0, window_bounds = array<i64: 1, 18, 128>}, {pipeline_mode = #tpu.pipeline_mode<synchronous>, transform_indices = @transform_1, window_bounds = array<i64: 384, 128>}, {pipeline_mode = #tpu.pipeline_mode<synchronous>, transform_indices = @transform_2, window_bounds = array<i64: 1, 128>}, {transform_indices = @transform_3, window_bounds = array<i64: 1, 16, 128>}]} {
    %c0 = arith.constant 0 : index
    %c0_0 = arith.constant 0 : index
    %c0_1 = arith.constant 0 : index
    %0 = vector.load %arg1[%c0, %c0_0, %c0_1] : memref<1x18x128xf32, #tpu.memory_space<vmem>>, vector<1x16x128xf32>
    %1 = vector.shape_cast %0 : vector<1x16x128xf32> to vector<16x128xf32>
    %c0_2 = arith.constant 0 : index
    %c1 = arith.constant 1 : index
    %c0_3 = arith.constant 0 : index
    %2 = vector.load %arg1[%c0_2, %c1, %c0_3] : memref<1x18x128xf32, #tpu.memory_space<vmem>>, vector<1x16x128xf32>
    %3 = vector.shape_cast %2 : vector<1x16x128xf32> to vector<16x128xf32>
    %c0_4 = arith.constant 0 : index
    %c2 = arith.constant 2 : index
    %c0_5 = arith.constant 0 : index
    %4 = vector.load %arg1[%c0_4, %c2, %c0_5] : memref<1x18x128xf32, #tpu.memory_space<vmem>>, vector<1x16x128xf32>
    %5 = vector.shape_cast %4 : vector<1x16x128xf32> to vector<16x128xf32>
    %6 = tpu.concatenate %1, %3, %5 in 1 : vector<16x128xf32>, vector<16x128xf32>, vector<16x128xf32> -> vector<16x384xf32>
    %c0_6 = arith.constant 0 : index
    %c0_7 = arith.constant 0 : index
    %7 = vector.load %arg2[%c0_6, %c0_7] : memref<384x128xf32, #tpu.memory_space<vmem>>, vector<384x128xf32>
    %cst = arith.constant dense<0.000000e+00> : vector<16x128xf32>
    %8 = tpu.matmul %6, %7, %cst {dimension_numbers = #tpu.dot_dimension_numbers<[1], [0], [0], [1], [0, 0, 1, 1], [], []>} : vector<16x384xf32>, vector<384x128xf32>, vector<16x128xf32> -> vector<16x128xf32>
    %c0_8 = arith.constant 0 : index
    %c0_9 = arith.constant 0 : index
    %9 = vector.load %arg3[%c0_8, %c0_9] : memref<1x128xf32, #tpu.memory_space<vmem>>, vector<1x128xf32>
    %10 = vector.broadcast %9 : vector<1x128xf32> to vector<16x128xf32>
    %11 = arith.addf %8, %10 : vector<16x128xf32>
    %cst_10 = arith.constant 0.00999999977 : f32
    %12 = vector.broadcast %cst_10 : f32 to vector<16x128xf32>
    %13 = arith.mulf %12, %11 : vector<16x128xf32>
    %14 = arith.maximumf %11, %13 : vector<16x128xf32>
    %15 = vector.shape_cast %14 : vector<16x128xf32> to vector<1x16x128xf32>
    %c0_11 = arith.constant 0 : index
    %c0_12 = arith.constant 0 : index
    %c0_13 = arith.constant 0 : index
    %16 = vector.load %arg4[%c0_11, %c0_12, %c0_13] : memref<1x16x128xf32, #tpu.memory_space<vmem>>, vector<1x16x128xf32>
    tpu.vector_store %arg4[%c0_11, %c0_12, %c0_13], %15 {strides = array<i32>} : memref<1x16x128xf32, #tpu.memory_space<vmem>>, vector<1x16x128xf32>,
    return
  }
  func.func @transform_0(%arg0: i32) -> (i32, i32, i32) {
    %c0_i32 = arith.constant 0 : i32
    %c0_i32_0 = arith.constant 0 : i32
    %c0_i32_1 = arith.constant 0 : i32
    return %arg0, %c0_i32, %c0_i32_0 : i32, i32, i32
  }
  func.func @transform_1(%arg0: i32) -> (i32, i32) {
    %c0_i32 = arith.constant 0 : i32
    %c0_i32_0 = arith.constant 0 : i32
    %c0_i32_1 = arith.constant 0 : i32
    return %c0_i32, %c0_i32_0 : i32, i32
  }
  func.func @transform_2(%arg0: i32) -> (i32, i32) {
    %c0_i32 = arith.constant 0 : i32
    %c0_i32_0 = arith.constant 0 : i32
    %c0_i32_1 = arith.constant 0 : i32
    return %c0_i32, %c0_i32_0 : i32, i32
  }
  func.func @transform_3(%arg0: i32) -> (i32, i32, i32) {
    %c0_i32 = arith.constant 0 : i32
    %c0_i32_0 = arith.constant 0 : i32
    %c0_i32_1 = arith.constant 0 : i32
    return %arg0, %c0_i32, %c0_i32_0 : i32, i32, i32
  }
}

</mosaic_0001>

<llo_original>
// kernel: tpu_custom_call.1
$region0: #{tpu_custom_call.1}
  #allocation0 [shape = 'u32[]', space=smem, size = 0x4, offset = 0x4, fixed_abs, tag = 'smem constant byte address 0x4 - core index']
  #allocation1 [shape = 'u32[144,128]{1,0:T(1,128)}', space=vmem, size = 0x12000, scoped, tag = 'internal scratch']
  %s0 = inlined_call_operand.vmem [shape: f32[2,18,128], index: 0, kind: input, shape index: {}]
  %s1 = inlined_call_operand.hbm [shape: f32[384,128], index: 1, kind: input, shape index: {}]
  %s2 = inlined_call_operand.vmem [shape: f32[1,128], index: 2, kind: input, shape index: {}]
  %s3 = inlined_call_operand.hbm [shape: f32[2,16,128], index: 3, kind: output, shape index: {}]
  %s4 = sld [smem:[#allocation0]]
  $region49: #{tpu_custom_call.1} parent=0
    _
  %s6 = ssub.s32 1, %s4
  %s7 = scalar_select 0, %s6, %s4
  $region1: #{tpu_custom_call.1} parent=0
    #allocation2 [shape = 'u8[196608]{0}', space=vmem, size = 0x30000, scoped, tag = 'input window, operand 1, single buffered']
    #allocation3 [shape = 's32[2]{0}', space=sflag, size = 0x8, scoped, tag = 'scoped memory for tpu_custom_call.1']
    #allocation4 [shape = 's32[2]{0}', space=sflag, size = 0x8, scoped, tag = 'scoped memory for tpu_custom_call.1']
    #allocation5 [shape = 'u8[16384]{0}', space=vmem, size = 0x4000, scoped, tag = 'output window, operand 0']
    %8 = vsyncpa [#allocation3], 0
    %9 = vsyncpa [#allocation4], 0
    %s10 = scalar_lea.sflag [#allocation4], 1
    %11 = vsyncpa %s10, 0
    loop: start=0, step=1, limit=4
    $region2: #{tpu_custom_call.1} parent=1 // loop_pre_header
      _
    $region3: #{tpu_custom_call.1} parent=1 // loop_header
      %s13 = sphi 0, %s17
      %p14 = scmp.ge.s32.totalorder %s13, 4
      %s23 = sphi 0, %s25
      %s26 = sphi 0, %s23
      %s27 = sphi 0, %s26
      %s43 = sphi 0, %s27
      %s47 = sphi 0, %s47
      %s49 = sphi 0, %s47
      %s50 = sphi 0, %s49
      %s64 = sphi 0, %s50
      %s68 = sphi 0, %s68
      %s70 = sphi 0, %s68
      %s71 = sphi 0, %s70
      %s85 = sphi 0, %s71
      %s91 = sphi 0, %s93
      %s94 = sphi 0, %s91
      %s95 = sphi 0, %s94
      %s111 = sphi 0, %s95
    $region4: #{tpu_custom_call.1} parent=1 // loop_header_branch
      %16 = sbr.rel (%p14) target = $region8
    $region5: #{tpu_custom_call.1} parent=1 // loop_body
      %s18 = ssub.s32 %s13, 1
      %s19 = ssub.s32 %s13, 2
      %s20 = sadd.s32 %s13, 1
      %s21 = ssub.s32 %s13, %s20
      %p22 = scmp.eq.s32.totalorder %s21, 0
      %s24 = sadd.s32 %s23, 1
      %s25 = scalar_select %p22, %s23, %s24
      %p28 = pneg %p22
      %p29 = scmp.eq.s32.totalorder %s13, 1
      %p30 = por %p28, %p29
      %p31 = scmp.ne.s32.totalorder %s23, %s26
      %p32 = scmp.eq.s32.totalorder %s13, 0
      %p33 = por %p31, %p32
      %p34 = scmp.ne.s32.totalorder %s23, %s26
      %p35 = scmp.eq.s32.totalorder %s18, 1
      %p36 = por %p34, %p35
      %p37 = scmp.ne.s32.totalorder %s26, %s27
      %p38 = scmp.eq.s32.totalorder %s18, 0
      %p39 = por %p37, %p38
      %p40 = scmp.ne.s32.totalorder %s26, %s27
      %p41 = scmp.eq.s32.totalorder %s19, 1
      %p42 = por %p40, %p41
      %p44 = scmp.ne.s32.totalorder %s27, %s43
      %p45 = scmp.eq.s32.totalorder %s19, 0
      %p46 = por %p44, %p45
      %s48 = sadd.s32 %s47, 1
      %p51 = scmp.eq.s32.totalorder %s13, 1
      %p52 = scmp.ne.s32.totalorder %s47, %s49
      %p53 = scmp.eq.s32.totalorder %s13, 0
      %p54 = por %p52, %p53
      %p55 = scmp.ne.s32.totalorder %s47, %s49
      %p56 = scmp.eq.s32.totalorder %s18, 1
      %p57 = por %p55, %p56
      %p58 = scmp.ne.s32.totalorder %s49, %s50
      %p59 = scmp.eq.s32.totalorder %s18, 0
      %p60 = por %p58, %p59
      %p61 = scmp.ne.s32.totalorder %s49, %s50
      %p62 = scmp.eq.s32.totalorder %s19, 1
      %p63 = por %p61, %p62
      %p65 = scmp.ne.s32.totalorder %s50, %s64
      %p66 = scmp.eq.s32.totalorder %s19, 0
      %p67 = por %p65, %p66
      %s69 = sadd.s32 %s68, 1
      %p72 = scmp.eq.s32.totalorder %s13, 1
      %p73 = scmp.ne.s32.totalorder %s68, %s70
      %p74 = scmp.eq.s32.totalorder %s13, 0
      %p75 = por %p73, %p74
      %p76 = scmp.ne.s32.totalorder %s68, %s70
      %p77 = scmp.eq.s32.totalorder %s18, 1
      %p78 = por %p76, %p77
      %p79 = scmp.ne.s32.totalorder %s70, %s71
      %p80 = scmp.eq.s32.totalorder %s18, 0
      %p81 = por %p79, %p80
      %p82 = scmp.ne.s32.totalorder %s70, %s71
      %p83 = scmp.eq.s32.totalorder %s19, 1
      %p84 = por %p82, %p83
      %p86 = scmp.ne.s32.totalorder %s71, %s85
      %p87 = scmp.eq.s32.totalorder %s19, 0
      %p88 = por %p86, %p87
      %s89 = ssub.s32 %s13, %s20
      %p90 = scmp.eq.s32.totalorder %s89, 0
      %s92 = sadd.s32 %s91, 1
      %s93 = scalar_select %p90, %s91, %s92
      %p96 = pneg %p90
      %p97 = scmp.eq.s32.totalorder %s13, 1
      %p98 = por %p96, %p97
      %p99 = scmp.ne.s32.totalorder %s91, %s94
      %p100 = scmp.eq.s32.totalorder %s13, 0
      %p101 = por %p99, %p100
      %p102 = scmp.ne.s32.totalorder %s91, %s94
      %p103 = scmp.eq.s32.totalorder %s18, 1
      %p104 = por %p102, %p103
      %p105 = scmp.ne.s32.totalorder %s94, %s95
      %p106 = scmp.eq.s32.totalorder %s18, 0
      %p107 = por %p105, %p106
      %p108 = scmp.ne.s32.totalorder %s94, %s95
      %p109 = scmp.eq.s32.totalorder %s19, 1
      %p110 = por %p108, %p109
      %p112 = scmp.ne.s32.totalorder %s95, %s111
      %p113 = scmp.eq.s32.totalorder %s19, 0
      %p114 = por %p112, %p113
      %p115 = scmp.le.s32.totalorder 1, %s13
      %p116 = scmp.lt.s32.totalorder %s13, 3
      %p117 = pnand %p115, %p116
      %p118 = pneg %p117
      // Predicated region
      $region9: #{tpu_custom_call.1} parent=5 // pred_check
        _
      $region10: #{tpu_custom_call.1} parent=5 // pred_check_branch
        %120 = sbr.rel (%p117) target = $region12
      $region11: #{tpu_custom_call.1} parent=5 // pred_region
        %s121 = ssub.s32 %s13, 1
        // Predicated region
        $region13: #{tpu_custom_call.1} parent=11 // pred_check
          %p122 = pneg %p60
        $region14: #{tpu_custom_call.1} parent=11 // pred_check_branch
          %124 = sbr.rel (%p122) target = $region16
        $region15: #{tpu_custom_call.1} parent=11 // pred_region
          %s126 = ssub.s32 6144, 6144
          %127 = vsyncadd [#allocation3], %s126
          %s128 = sshll.u32 [#allocation2], 4
          %s129 = int_to_ptr.vmem [resolvable:$true] %s128
          %134 = dma.hbm_to_vmem [thread:$0]  %s1, 6144, %s129, [#allocation3], 128, 128, 8
        $region16: #{tpu_custom_call.1} parent=11 // pred_fallthru
          _
        // Predicated region
        $region17: #{tpu_custom_call.1} parent=11 // pred_check
          %p135 = pneg %p81
        $region18: #{tpu_custom_call.1} parent=11 // pred_check_branch
          %137 = sbr.rel (%p135) target = $region20
        $region19: #{tpu_custom_call.1} parent=11 // pred_region
          _
        $region20: #{tpu_custom_call.1} parent=11 // pred_fallthru
          _
      $region12: #{tpu_custom_call.1} parent=5 // pred_fallthru
        _
      %p138 = scmp.lt.s32.totalorder %s13, 2
      // Predicated region
      $region21: #{tpu_custom_call.1} parent=5 // pred_check
        %p139 = pneg %p138
      $region22: #{tpu_custom_call.1} parent=5 // pred_check_branch
        %141 = sbr.rel (%p139) target = $region24
      $region23: #{tpu_custom_call.1} parent=5 // pred_region
        // Predicated region
        $region25: #{tpu_custom_call.1} parent=23 // pred_check
          %p142 = pneg %p33
        $region26: #{tpu_custom_call.1} parent=23 // pred_check_branch
          %144 = sbr.rel (%p142) target = $region28
        $region27: #{tpu_custom_call.1} parent=23 // pred_region
          %p145 = scmp.lt.s32.totalorder %s13, 1
          %s146 = scalar_select %p145, %s13, 1
          %s147 = smul.addr %s146, 3
          %s148 = smul.addr %s147, 8
          %s149 = scalar_lea.vmem %s0, %s148
        $region28: #{tpu_custom_call.1} parent=23 // pred_fallthru
          _
      $region24: #{tpu_custom_call.1} parent=5 // pred_fallthru
        _
      %p150 = scmp.le.s32.totalorder 1, %s13
      %p151 = scmp.lt.s32.totalorder %s13, 3
      %p152 = pnand %p150, %p151
      %p153 = pneg %p152
      // Predicated region
      $region29: #{tpu_custom_call.1} parent=5 // pred_check
        _
      $region30: #{tpu_custom_call.1} parent=5 // pred_check_branch
        %155 = sbr.rel (%p152) target = $region32
      $region31: #{tpu_custom_call.1} parent=5 // pred_region
        %s156 = ssub.s32 %s13, 1
        // Predicated region
        $region33: #{tpu_custom_call.1} parent=31 // pred_check
          %p157 = pneg %p60
        $region34: #{tpu_custom_call.1} parent=31 // pred_check_branch
          %159 = sbr.rel (%p157) target = $region36
        $region35: #{tpu_custom_call.1} parent=31 // pred_region
          %160 = dma.done [#allocation3], 6144
        $region36: #{tpu_custom_call.1} parent=31 // pred_fallthru
          _
        %p161 = scmp.lt.s32.totalorder %s18, 1
        %s162 = scalar_select %p161, %s18, 1
        %s163 = smul.addr %s162, 3
        %s164 = smul.addr %s163, 8
        %s165 = scalar_lea.vmem %s0, %s164
        %p166 = pneg %p39
        %p167 = pneg %p36
        %p168 = pneg %p60
        %p169 = pneg %p57
        %p170 = pneg %p81
        %p171 = pneg %p78
        %p172 = pneg %p107
        %p173 = pneg %p104
        %s174 = sand.u32 %s94, 1
        %s175 = scalar_lea.sflag [#allocation4], %s174
        %s176 = sand.u32 %s94, 1
        %s177 = smul.addr %s176, 16
        %s178 = scalar_lea.vmem [#allocation5], %s177
        %p179 = scmp.lt.s32.totalorder %s18, 1
        %s180 = scalar_select %p179, %s18, 1
        %s181 = smul.addr %s180, 3
        %s182 = smul.addr %s181, 8
        %s183 = scalar_lea.vmem %s0, %s182
        %v184 = vld [vmem:[%s183] sm:$0xff]
        %v185 = vld [vmem:[%s183 + $0x8] sm:$0xff]
        %v186 = vld [vmem:[%s183 + $0x1] sm:$0xff]
        %v187 = vld [vmem:[%s183 + $0x9] sm:$0xff]
        %v188 = vld [vmem:[%s183 + $0x2] sm:$0xff]
        %v189 = vld [vmem:[%s183 + $0xa] sm:$0xff]
        %v190 = vld [vmem:[#allocation2] sm:$0xff]
        %v191 = vld [vmem:[#allocation2 + $0x8] sm:$0xff]
        %v192 = vld [vmem:[#allocation2 + $0x10] sm:$0xff]
        %v193 = vld [vmem:[#allocation2 + $0x18] sm:$0xff]
        %v194 = vld [vmem:[#allocation2 + $0x20] sm:$0xff]
        %v195 = vld [vmem:[#allocation2 + $0x28] sm:$0xff]
        %v196 = vld [vmem:[#allocation2 + $0x30] sm:$0xff]
        %v197 = vld [vmem:[#allocation2 + $0x38] sm:$0xff]
        %v198 = vld [vmem:[#allocation2 + $0x40] sm:$0xff]
        %v199 = vld [vmem:[#allocation2 + $0x48] sm:$0xff]
        %v200 = vld [vmem:[#allocation2 + $0x50] sm:$0xff]
        %v201 = vld [vmem:[#allocation2 + $0x58] sm:$0xff]
        %v202 = vld [vmem:[#allocation2 + $0x60] sm:$0xff]
        %v203 = vld [vmem:[#allocation2 + $0x68] sm:$0xff]
        %v204 = vld [vmem:[#allocation2 + $0x70] sm:$0xff]
        %v205 = vld [vmem:[#allocation2 + $0x78] sm:$0xff]
        %v206 = vld [vmem:[#allocation2 + $0x80] sm:$0xff]
        %v207 = vld [vmem:[#allocation2 + $0x88] sm:$0xff]
        %v208 = vld [vmem:[#allocation2 + $0x90] sm:$0xff]
        %v209 = vld [vmem:[#allocation2 + $0x98] sm:$0xff]
        %v210 = vld [vmem:[#allocation2 + $0xa0] sm:$0xff]
        %v211 = vld [vmem:[#allocation2 + $0xa8] sm:$0xff]
        %v212 = vld [vmem:[#allocation2 + $0xb0] sm:$0xff]
        %v213 = vld [vmem:[#allocation2 + $0xb8] sm:$0xff]
        %v214 = vld [vmem:[#allocation2 + $0xc0] sm:$0xff]
        %v215 = vld [vmem:[#allocation2 + $0xc8] sm:$0xff]
        %v216 = vld [vmem:[#allocation2 + $0xd0] sm:$0xff]
        %v217 = vld [vmem:[#allocation2 + $0xd8] sm:$0xff]
        %v218 = vld [vmem:[#allocation2 + $0xe0] sm:$0xff]
        %v219 = vld [vmem:[#allocation2 + $0xe8] sm:$0xff]
        %v220 = vld [vmem:[#allocation2 + $0xf0] sm:$0xff]
        %v221 = vld [vmem:[#allocation2 + $0xf8] sm:$0xff]
        %v222 = vld [vmem:[#allocation2 + $0x100] sm:$0xff]
        %v223 = vld [vmem:[#allocation2 + $0x108] sm:$0xff]
        %v224 = vld [vmem:[#allocation2 + $0x110] sm:$0xff]
        %v225 = vld [vmem:[#allocation2 + $0x118] sm:$0xff]
        %v226 = vld [vmem:[#allocation2 + $0x120] sm:$0xff]
        %v227 = vld [vmem:[#allocation2 + $0x128] sm:$0xff]
        %v228 = vld [vmem:[#allocation2 + $0x130] sm:$0xff]
        %v229 = vld [vmem:[#allocation2 + $0x138] sm:$0xff]
        %v230 = vld [vmem:[#allocation2 + $0x140] sm:$0xff]
        %v231 = vld [vmem:[#allocation2 + $0x148] sm:$0xff]
        %v232 = vld [vmem:[#allocation2 + $0x150] sm:$0xff]
        %v233 = vld [vmem:[#allocation2 + $0x158] sm:$0xff]
        %v234 = vld [vmem:[#allocation2 + $0x160] sm:$0xff]
        %v235 = vld [vmem:[#allocation2 + $0x168] sm:$0xff]
        %v236 = vld [vmem:[#allocation2 + $0x170] sm:$0xff]
        %v237 = vld [vmem:[#allocation2 + $0x178] sm:$0xff]
        %v238 = vld [vmem:[%s2] sm:$0x1]
        %v240 = vlaneseq
        %v241 = vshrl.u32 %v240, 7
        %v242 = vsub.s32 0, %v241
        %v243 = vrot.slane %v238, %v242
        %245 = vmatprep.subr.mxu0 0.0
        %246 = vmatpush1.msra.mxu0 %v205
        %247 = vmatprep.subr.mxu0 0.0
        %248 = vmatpush1.msra.mxu0 %v204
        %249 = vmatprep.subr.mxu0 0.0
        %250 = vmatpush1.msra.mxu0 %v203
        %251 = vmatprep.subr.mxu0 0.0
        %252 = vmatpush1.msra.mxu0 %v202
        %253 = vmatprep.subr.mxu0 0.0
        %254 = vmatpush1.msra.mxu0 %v201
        %255 = vmatprep.subr.mxu0 0.0
        %256 = vmatpush1.msra.mxu0 %v200
        %257 = vmatprep.subr.mxu0 0.0
        %258 = vmatpush1.msra.mxu0 %v199
        %259 = vmatprep.subr.mxu0 0.0
        %260 = vmatpush1.msra.mxu0 %v198
        %261 = vmatprep.subr.mxu0 0.0
        %262 = vmatpush1.msra.mxu0 %v197
        %263 = vmatprep.subr.mxu0 0.0
        %264 = vmatpush1.msra.mxu0 %v196
        %265 = vmatprep.subr.mxu0 0.0
        %266 = vmatpush1.msra.mxu0 %v195
        %267 = vmatprep.subr.mxu0 0.0
        %268 = vmatpush1.msra.mxu0 %v194
        %269 = vmatprep.subr.mxu0 0.0
        %270 = vmatpush1.msra.mxu0 %v193
        %271 = vmatprep.subr.mxu0 0.0
        %272 = vmatpush1.msra.mxu0 %v192
        %273 = vmatprep.subr.mxu0 0.0
        %274 = vmatpush1.msra.mxu0 %v191
        %275 = vmatprep.subr.mxu0 0.0
        %276 = vmatpush1.msra.mxu0 %v190
        %277 = vmatprep.subr.mxu0 0.0
        %278 = vmatpush2.msra.mxu0 %v221
        %279 = vmatprep.subr.mxu0 0.0
        %280 = vmatpush2.msra.mxu0 %v220
        %281 = vmatprep.subr.mxu0 0.0
        %282 = vmatpush2.msra.mxu0 %v219
        %283 = vmatprep.subr.mxu0 0.0
        %284 = vmatpush2.msra.mxu0 %v218
        %285 = vmatprep.subr.mxu0 0.0
        %286 = vmatpush2.msra.mxu0 %v217
        %287 = vmatprep.subr.mxu0 0.0
        %288 = vmatpush2.msra.mxu0 %v216
        %289 = vmatprep.subr.mxu0 0.0
        %290 = vmatpush2.msra.mxu0 %v215
        %291 = vmatprep.subr.mxu0 0.0
        %292 = vmatpush2.msra.mxu0 %v214
        %293 = vmatprep.subr.mxu0 0.0
        %294 = vmatpush2.msra.mxu0 %v213
        %295 = vmatprep.subr.mxu0 0.0
        %296 = vmatpush2.msra.mxu0 %v212
        %297 = vmatprep.subr.mxu0 0.0
        %298 = vmatpush2.msra.mxu0 %v211
        %299 = vmatprep.subr.mxu0 0.0
        %300 = vmatpush2.msra.mxu0 %v210
        %301 = vmatprep.subr.mxu0 0.0
        %302 = vmatpush2.msra.mxu0 %v209
        %303 = vmatprep.subr.mxu0 0.0
        %304 = vmatpush2.msra.mxu0 %v208
        %305 = vmatprep.subr.mxu0 0.0
        %306 = vmatpush2.msra.mxu0 %v207
        %307 = vmatprep.subr.mxu0 0.0
        %308 = vmatpush2.msra.mxu0 %v206
        %309 = vmatprep.mubr.f32.mxu0 %v186
        %310 = vmatmul.mubr.f32.gmra.mxu0 %v184
        %v311 = vpop.f32.mrf.mxu0
        %v312 = vadd.f32 %v243, %v311
        %v313 = vpop.f32.mrf.mxu0
        %314 = vmatprep.mubr.f32.mxu0 %v187
        %315 = vmatmul.mubr.f32.gmra.mxu0 %v185
        %v316 = vpop.f32.mrf.mxu0
        %v317 = vadd.f32 %v243, %v316
        %v318 = vpop.f32.mrf.mxu0
        %319 = vdwg.mxu0
        %320 = vmatprep.subr.mxu0 0.0
        %321 = vmatpush1.msra.mxu0 %v237
        %322 = vmatprep.subr.mxu0 0.0
        %323 = vmatpush1.msra.mxu0 %v236
        %324 = vmatprep.subr.mxu0 0.0
        %325 = vmatpush1.msra.mxu0 %v235
        %326 = vmatprep.subr.mxu0 0.0
        %327 = vmatpush1.msra.mxu0 %v234
        %328 = vmatprep.subr.mxu0 0.0
        %329 = vmatpush1.msra.mxu0 %v233
        %330 = vmatprep.subr.mxu0 0.0
        %331 = vmatpush1.msra.mxu0 %v232
        %332 = vmatprep.subr.mxu0 0.0
        %333 = vmatpush1.msra.mxu0 %v231
        %334 = vmatprep.subr.mxu0 0.0
        %335 = vmatpush1.msra.mxu0 %v230
        %336 = vmatprep.subr.mxu0 0.0
        %337 = vmatpush1.msra.mxu0 %v229
        %338 = vmatprep.subr.mxu0 0.0
        %339 = vmatpush1.msra.mxu0 %v228
        %340 = vmatprep.subr.mxu0 0.0
        %341 = vmatpush1.msra.mxu0 %v227
        %342 = vmatprep.subr.mxu0 0.0
        %343 = vmatpush1.msra.mxu0 %v226
        %344 = vmatprep.subr.mxu0 0.0
        %345 = vmatpush1.msra.mxu0 %v225
        %346 = vmatprep.subr.mxu0 0.0
        %347 = vmatpush1.msra.mxu0 %v224
        %348 = vmatprep.subr.mxu0 0.0
        %349 = vmatpush1.msra.mxu0 %v223
        %350 = vmatprep.subr.mxu0 0.0
        %351 = vmatpush1.msra.mxu0 %v222
        %352 = vmatprep.subr.mxu0 0.0
        %353 = vmatpush2.msra.mxu0 0.0
        %354 = vmatprep.subr.mxu0 0.0
        %355 = vmatpush2.msra.mxu0 0.0
        %356 = vmatprep.subr.mxu0 0.0
        %357 = vmatpush2.msra.mxu0 0.0
        %358 = vmatprep.subr.mxu0 0.0
        %359 = vmatpush2.msra.mxu0 0.0
        %360 = vmatprep.subr.mxu0 0.0
        %361 = vmatpush2.msra.mxu0 0.0
        %362 = vmatprep.subr.mxu0 0.0
        %363 = vmatpush2.msra.mxu0 0.0
        %364 = vmatprep.subr.mxu0 0.0
        %365 = vmatpush2.msra.mxu0 0.0
        %366 = vmatprep.subr.mxu0 0.0
        %367 = vmatpush2.msra.mxu0 0.0
        %368 = vmatprep.subr.mxu0 0.0
        %369 = vmatpush2.msra.mxu0 0.0
        %370 = vmatprep.subr.mxu0 0.0
        %371 = vmatpush2.msra.mxu0 0.0
        %372 = vmatprep.subr.mxu0 0.0
        %373 = vmatpush2.msra.mxu0 0.0
        %374 = vmatprep.subr.mxu0 0.0
        %375 = vmatpush2.msra.mxu0 0.0
        %376 = vmatprep.subr.mxu0 0.0
        %377 = vmatpush2.msra.mxu0 0.0
        %378 = vmatprep.subr.mxu0 0.0
        %379 = vmatpush2.msra.mxu0 0.0
        %380 = vmatprep.subr.mxu0 0.0
        %381 = vmatpush2.msra.mxu0 0.0
        %382 = vmatprep.subr.mxu0 0.0
        %383 = vmatpush2.msra.mxu0 0.0
        %384 = vmatprep.mubr.f32.mxu0 0.0
        %385 = vmatmul.mubr.f32.gmra.mxu0 %v188
        %v386 = vpop.f32.mrf.mxu0
        %v387 = vadd.f32 %v312, %v386
        %v388 = vpop.f32.mrf.mxu0
        %389 = vmatprep.mubr.f32.mxu0 0.0
        %390 = vmatmul.mubr.f32.gmra.mxu0 %v189
        %v391 = vpop.f32.mrf.mxu0
        %v392 = vadd.f32 %v317, %v391
        %v393 = vpop.f32.mrf.mxu0
        %394 = vdwg.mxu0
        %v395 = vmul.f32 %v387, 0.01
        %v396 = vmul.f32 %v392, 0.01
        %v397 = vmax.f32 %v387, %v395
        %v398 = vmax.f32 %v392, %v396
        %399 = vst [vmem:[%s178] sm:$0xff] %v397
        %400 = vst [vmem:[%s178 + $0x8] sm:$0xff] %v398
        %s401 = sand.u32 %s94, 1
        %s402 = scalar_lea.sflag [#allocation4], %s401
        %s403 = sand.u32 %s94, 1
        %s404 = smul.addr %s403, 16
        %s405 = scalar_lea.vmem [#allocation5], %s404
        // Predicated region
        $region37: #{tpu_custom_call.1} parent=31 // pred_check
          %p406 = pneg %p104
        $region38: #{tpu_custom_call.1} parent=31 // pred_check_branch
          %408 = sbr.rel (%p406) target = $region40
        $region39: #{tpu_custom_call.1} parent=31 // pred_region
          %s410 = ssub.s32 256, 256
          %411 = vsyncadd %s402, %s410
          %s412 = smul.addr %s18, 2
          %s413 = smul.addr %s412, 128
          %s414 = scalar_lea.hbm %s3, %s413
          %s415 = sshll.u32 %s405, 4
          %s416 = int_to_ptr.vmem [resolvable:$true] %s415
          %421 = dma.vmem_to_hbm [thread:$0]  %s416, 256, %s414, %s402, 128, 128, 8
        $region40: #{tpu_custom_call.1} parent=31 // pred_fallthru
          _
      $region32: #{tpu_custom_call.1} parent=5 // pred_fallthru
        _
      %p422 = scmp.le.s32.totalorder 2, %s13
      // Predicated region
      $region41: #{tpu_custom_call.1} parent=5 // pred_check
        %p423 = pneg %p422
      $region42: #{tpu_custom_call.1} parent=5 // pred_check_branch
        %425 = sbr.rel (%p423) target = $region44
      $region43: #{tpu_custom_call.1} parent=5 // pred_region
        %s426 = ssub.s32 %s13, 2
        // Predicated region
        $region45: #{tpu_custom_call.1} parent=43 // pred_check
          %p427 = pneg %p110
        $region46: #{tpu_custom_call.1} parent=43 // pred_check_branch
          %429 = sbr.rel (%p427) target = $region48
        $region47: #{tpu_custom_call.1} parent=43 // pred_region
          %s430 = sand.u32 %s95, 1
          %s431 = scalar_lea.sflag [#allocation4], %s430
          %s432 = sand.u32 %s95, 1
          %s433 = smul.addr %s432, 16
          %s434 = scalar_lea.vmem [#allocation5], %s433
          %435 = dma.done %s431, 256
        $region48: #{tpu_custom_call.1} parent=43 // pred_fallthru
          _
      $region44: #{tpu_custom_call.1} parent=5 // pred_fallthru
        _
    $region6: #{tpu_custom_call.1} parent=1 // loop_footer
      %s17 = sadd.s32 1, %s13
    $region7: #{tpu_custom_call.1} parent=1 // loop_footer_branch
      %12 = sbr.rel target = $region3
    $region8: #{tpu_custom_call.1} parent=1 // loop_exit
      _
    %436 = vsyncpa [#allocation3], 1
    %s437 = scalar_lea.sflag [#allocation3], 1
    %438 = vsyncpa %s437, 1
    %439 = vsyncpa [#allocation4], 1
    %s440 = scalar_lea.sflag [#allocation4], 1
    %441 = vsyncpa %s440, 1

</llo_original>
